<compile_context>
chip_gen: v7x
topology: tpu7x:2x2x1
jax: 0.10.0
libtpu: 0.0.40
codegen_flags: <defaults>
</compile_context>

<pallas_src>
import functools

import jax
import jax.numpy as jnp
from jax.experimental import pallas as pl
from jax.experimental.pallas import tpu as pltpu

_NEG = -1e30  # finite "minus infinity" sentinel (keeps exp(m_old - m_new) NaN-free)


def _asp_kernel(x_ref, w1_ref, b1_ref, w2_ref, b2_ref, out_ref,
                m_sc, l_sc, wm_sc, wx2_sc, *, total_t):
    # x_ref:   (1, C, Tt) f32 (native precision)
    # w1_ref:  (A, C) bf16   b1_ref: (A, 1) f32
    # w2_ref:  (C, A) bf16   b2_ref: (C, 1) f32
    # out_ref: (1, 1, 2C) f32  (lane-dense: 2C on the lane axis)
    # scratch: m/l/wm/wx2 : (C, SLAB) f32 per-lane-slot online-softmax state
    C = x_ref.shape[1]
    Tt = x_ref.shape[2]
    SLAB = m_sc.shape[1]          # 128 normally; == Tt for tiny (<128) sequences
    k = Tt // SLAB                # number of lane slabs per time tile
    has_tail = (total_t % Tt) != 0

    t = pl.program_id(1)
    nt = pl.num_programs(1)

    @pl.when(t == 0)
    def _init():
        m_sc[...] = jnp.full_like(m_sc, _NEG)
        l_sc[...] = jnp.zeros_like(l_sc)
        wm_sc[...] = jnp.zeros_like(wm_sc)
        wx2_sc[...] = jnp.zeros_like(wx2_sc)

    x_f32 = x_ref[0].astype(jnp.float32)      # (C, Tt) statistics operand (f32)
    x_bf = x_f32.astype(jnp.bfloat16)         # MXU operand only

    # linear1 (Conv1d k=1) + tanh  -- bf16 MXU, f32 accumulate
    h = jnp.tanh(
        jnp.dot(w1_ref[...], x_bf, preferred_element_type=jnp.float32)
        + b1_ref[...]
    )                                          # (A, Tt) f32

    # linear2 (Conv1d k=1)
    s = jnp.dot(w2_ref[...], h.astype(jnp.bfloat16),
                preferred_element_type=jnp.float32) + b2_ref[...]    # (C, Tt) f32

    # -------- per-lane-slot online softmax + attentive-stats accumulation --------
    valid = total_t - t * Tt                   # valid columns in this tile (traced scalar)
    lane = jax.lax.broadcasted_iota(jnp.int32, (C, SLAB), 1)

    # Per-tile max per lane slot (pure elementwise VPU max across slabs, no XLU).
    s_slabs = []
    tile_max = None
    for g in range(k):
        sg = s[:, g * SLAB:(g + 1) * SLAB]
        if has_tail:
            sg = jnp.where(lane < (valid - g * SLAB), sg, _NEG)
        s_slabs.append(sg)
        tile_max = sg if tile_max is None else jnp.maximum(tile_max, sg)

    m_old = m_sc[...]
    m_new = jnp.maximum(m_old, tile_max)       # (C, SLAB)
    scale = jnp.exp(m_old - m_new)             # exp(0)=1 when nothing new (no NaN w/ _NEG)

    l_acc = scale * l_sc[...]
    wm_acc = scale * wm_sc[...]
    wx2_acc = scale * wx2_sc[...]
    for g in range(k):
        p = jnp.exp(s_slabs[g] - m_new)        # (C, SLAB); masked cols underflow to 0
        xg = x_f32[:, g * SLAB:(g + 1) * SLAB]
        if has_tail:
            xg = jnp.where(lane < (valid - g * SLAB), xg, 0.0)
        px = p * xg
        l_acc = l_acc + p
        wm_acc = wm_acc + px
        wx2_acc = wx2_acc + px * xg
    l_sc[...] = l_acc
    wm_sc[...] = wm_acc
    wx2_sc[...] = wx2_acc
    m_sc[...] = m_new

    @pl.when(t == nt - 1)
    def _finalize():
        # Combine the SLAB per-lane partial states: one cross-lane max + 3 sums, once.
        gmax = jnp.max(m_new, axis=-1, keepdims=True)            # (C, 1)
        r = jnp.exp(m_new - gmax)                                # (C, SLAB)
        denom = jnp.sum(r * l_acc, axis=-1, keepdims=True)       # (C, 1)
        wm = jnp.sum(r * wm_acc, axis=-1, keepdims=True)
        wx2 = jnp.sum(r * wx2_acc, axis=-1, keepdims=True)
        mean = wm / denom
        ex2 = wx2 / denom
        var = ex2 - mean * mean
        std = jnp.sqrt(jnp.maximum(var, 1e-9))
        # cat([mean, std], dim=1) -> lane-dense (1, 2C) row
        out_ref[0] = jnp.transpose(jnp.concatenate([mean, std], axis=0))


def _choose_t_tile(T, max_tile=512):
    """Time-tile width: multiple of 128 (lane slabs), capped so f32 temporaries stay
    comfortably inside scoped VMEM on every TPU generation (incl. v7x's 64 MiB)."""
    if T < 128:
        return T                      # single ragged tile, slab width == T
    return min(max_tile, (T // 128) * 128)


def attentive_stats_pool(x, w1, b1, w2, b2, *, t_tile=None,
                         vmem_limit_bytes=48 * 1024 * 1024):
    """x: (B, C, T) (native dtype, f32 expected). w1: (A, C), b1: (A,), w2: (C, A), b2: (C,).
    Returns (B, 2C) f32 = torch.cat([mean, std], dim=1)."""
    B, C, T = x.shape
    A = w1.shape[0]
    if t_tile is None:
        t_tile = _choose_t_tile(T)
    assert 0 < t_tile <= T
    if t_tile >= 128:
        assert t_tile % 128 == 0, "time tile must be a multiple of 128 lanes"
        slab = 128
    else:
        assert t_tile == T
        slab = t_tile
    nt = pl.cdiv(T, t_tile)           # partial last tile is masked in-kernel

    # Resident weights as bf16 MXU operands (tiny); biases stay f32 (post-accumulation add).
    w1_bf = w1.astype(jnp.bfloat16)
    w2_bf = w2.astype(jnp.bfloat16)
    b1c = b1.reshape(A, 1).astype(jnp.float32)
    b2c = b2.reshape(C, 1).astype(jnp.float32)

    kernel = functools.partial(_asp_kernel, total_t=T)

    out = pl.pallas_call(
        kernel,
        out_shape=jax.ShapeDtypeStruct((B, 1, 2 * C), jnp.float32),
        grid_spec=pltpu.PrefetchScalarGridSpec(
            num_scalar_prefetch=0,
            grid=(B, nt),
            in_specs=[
                pl.BlockSpec((1, C, t_tile), lambda b, t: (b, 0, t)),   # x tile (f32)
                pl.BlockSpec((A, C), lambda b, t: (0, 0)),              # W1 (resident)
                pl.BlockSpec((A, 1), lambda b, t: (0, 0)),              # b1
                pl.BlockSpec((C, A), lambda b, t: (0, 0)),              # W2 (resident)
                pl.BlockSpec((C, 1), lambda b, t: (0, 0)),              # b2
            ],
            out_specs=pl.BlockSpec((1, 1, 2 * C), lambda b, t: (b, 0, 0)),
            scratch_shapes=[
                pltpu.VMEM((C, slab), jnp.float32),   # running per-lane max
                pltpu.VMEM((C, slab), jnp.float32),   # running per-lane denominator
                pltpu.VMEM((C, slab), jnp.float32),   # running per-lane sum p*x
                pltpu.VMEM((C, slab), jnp.float32),   # running per-lane sum p*x^2
            ],
        ),
        compiler_params=pltpu.CompilerParams(
            dimension_semantics=("parallel", "arbitrary"),
            vmem_limit_bytes=vmem_limit_bytes,
        ),
    )(x, w1_bf, b1c, w2_bf, b2c)

    return out[:, 0, :]                               # (B, 2C)


def _reference(x, w1, b1, w2, b2):
    # plain-JAX (f32) reproduction of the torch forward for verification
    h = jnp.tanh(jnp.einsum("ac,bct->bat", w1, x) + b1[None, :, None])
    s = jnp.einsum("ca,bat->bct", w2, h) + b2[None, :, None]
    alpha = jax.nn.softmax(s, axis=2)
    mean = jnp.sum(alpha * x, axis=2)
    residuals = jnp.sum(alpha * x * x, axis=2) - mean**2
    std = jnp.sqrt(jnp.maximum(residuals, 1e-9))
    return jnp.concatenate([mean, std], axis=1)


if __name__ == "__main__":
    # Small shapes consistent with the module: x is (B, in_dim, T)
    B, C, T = 2, 16, 384
    A = 32  # attention_channels (small synthetic value)

    key = jax.random.PRNGKey(0)
    kx, kw1, kb1, kw2, kb2 = jax.random.split(key, 5)

    x = jax.random.normal(kx, (B, C, T), dtype=jnp.float32)
    # Conv1d(in_dim, A, kernel_size=1) weights -> (A, C); biases -> (A,) / (C,)
    w1 = jax.random.normal(kw1, (A, C), dtype=jnp.float32) * 0.1
    b1 = jax.random.normal(kb1, (A,), dtype=jnp.float32) * 0.1
    w2 = jax.random.normal(kw2, (C, A), dtype=jnp.float32) * 0.1
    b2 = jax.random.normal(kb2, (C,), dtype=jnp.float32) * 0.1

    ref = _reference(x, w1, b1, w2, b2)

    # Default tiling: single 384-wide tile, three 128-lane slabs.
    out1 = jax.block_until_ready(attentive_stats_pool(x, w1, b1, w2, b2))
    # Forced multi-tile path: 256-wide tiles -> last tile is half padding (tail masking
    # + online accumulation across tiles exercised).
    out2 = jax.block_until_ready(attentive_stats_pool(x, w1, b1, w2, b2, t_tile=256))

    assert out1.shape == (B, 2 * C), out1.shape
    assert out2.shape == (B, 2 * C), out2.shape
    # bf16 matmul operands (scores) -> relaxed tolerance vs pure-f32 reference
    assert jnp.allclose(out1, ref, atol=3e-2, rtol=3e-2), "mismatch vs reference (default tiling)"
    assert jnp.allclose(out2, ref, atol=3e-2, rtol=3e-2), "mismatch vs reference (tiled + tail mask)"

    print("KERNEL_OK")
</pallas_src>

<mosaic_0001>
module attributes {stable_mosaic.version = 11 : i64} {
  func.func @_asp_kernel(%arg0: i32, %arg1: i32, %arg2: memref<1x16x384xf32, #tpu.memory_space<vmem>>, %arg3: memref<32x16xbf16, #tpu.memory_space<vmem>>, %arg4: memref<32x1xf32, #tpu.memory_space<vmem>>, %arg5: memref<16x32xbf16, #tpu.memory_space<vmem>>, %arg6: memref<16x1xf32, #tpu.memory_space<vmem>>, %arg7: memref<1x1x32xf32, #tpu.memory_space<vmem>>, %arg8: memref<16x128xf32, #tpu.memory_space<vmem>>, %arg9: memref<16x128xf32, #tpu.memory_space<vmem>>, %arg10: memref<16x128xf32, #tpu.memory_space<vmem>>, %arg11: memref<16x128xf32, #tpu.memory_space<vmem>>) attributes {dimension_semantics = [#tpu.dimension_semantics<parallel>, #tpu.dimension_semantics<arbitrary>], iteration_bounds = array<i64: 2, 1>, scalar_prefetch = 0 : i64, scratch_operands = 4 : i64, tpu.core_type = #tpu.core_type<tc>, window_params = [{transform_indices = @transform_0, window_bounds = array<i64: 1, 16, 384>}, {pipeline_mode = #tpu.pipeline_mode<synchronous>, transform_indices = @transform_1, window_bounds = array<i64: 32, 16>}, {pipeline_mode = #tpu.pipeline_mode<synchronous>, transform_indices = @transform_2, window_bounds = array<i64: 32, 1>}, {pipeline_mode = #tpu.pipeline_mode<synchronous>, transform_indices = @transform_3, window_bounds = array<i64: 16, 32>}, {pipeline_mode = #tpu.pipeline_mode<synchronous>, transform_indices = @transform_4, window_bounds = array<i64: 16, 1>}, {transform_indices = @transform_5, window_bounds = array<i64: 1, 1, 32>}]} {
    %c0_i32 = arith.constant 0 : i32
    %0 = arith.cmpi eq, %arg1, %c0_i32 : i32
    %1 = arith.extui %0 : i1 to i32
    %c0_i32_0 = arith.constant 0 : i32
    %2 = arith.cmpi ne, %1, %c0_i32_0 : i32
    scf.if %2 {
      %cst_30 = arith.constant -1.000000e+30 : f32
      %64 = vector.broadcast %cst_30 : f32 to vector<16x128xf32>
      %c0_31 = arith.constant 0 : index
      %c0_32 = arith.constant 0 : index
      %65 = vector.load %arg8[%c0_31, %c0_32] : memref<16x128xf32, #tpu.memory_space<vmem>>, vector<16x128xf32>
      tpu.vector_store %arg8[%c0_31, %c0_32], %64 {strides = array<i32>} : memref<16x128xf32, #tpu.memory_space<vmem>>, vector<16x128xf32>,
      %cst_33 = arith.constant 0.000000e+00 : f32
      %66 = vector.broadcast %cst_33 : f32 to vector<16x128xf32>
      %c0_34 = arith.constant 0 : index
      %c0_35 = arith.constant 0 : index
      %67 = vector.load %arg9[%c0_34, %c0_35] : memref<16x128xf32, #tpu.memory_space<vmem>>, vector<16x128xf32>
      tpu.vector_store %arg9[%c0_34, %c0_35], %66 {strides = array<i32>} : memref<16x128xf32, #tpu.memory_space<vmem>>, vector<16x128xf32>,
      %cst_36 = arith.constant 0.000000e+00 : f32
      %68 = vector.broadcast %cst_36 : f32 to vector<16x128xf32>
      %c0_37 = arith.constant 0 : index
      %c0_38 = arith.constant 0 : index
      %69 = vector.load %arg10[%c0_37, %c0_38] : memref<16x128xf32, #tpu.memory_space<vmem>>, vector<16x128xf32>
      tpu.vector_store %arg10[%c0_37, %c0_38], %68 {strides = array<i32>} : memref<16x128xf32, #tpu.memory_space<vmem>>, vector<16x128xf32>,
      %cst_39 = arith.constant 0.000000e+00 : f32
      %70 = vector.broadcast %cst_39 : f32 to vector<16x128xf32>
      %c0_40 = arith.constant 0 : index
      %c0_41 = arith.constant 0 : index
      %71 = vector.load %arg11[%c0_40, %c0_41] : memref<16x128xf32, #tpu.memory_space<vmem>>, vector<16x128xf32>
      tpu.vector_store %arg11[%c0_40, %c0_41], %70 {strides = array<i32>} : memref<16x128xf32, #tpu.memory_space<vmem>>, vector<16x128xf32>,
    } else {
    }
    %c0 = arith.constant 0 : index
    %c0_1 = arith.constant 0 : index
    %c0_2 = arith.constant 0 : index
    %3 = vector.load %arg2[%c0, %c0_1, %c0_2] : memref<1x16x384xf32, #tpu.memory_space<vmem>>, vector<1x16x384xf32>
    %4 = vector.shape_cast %3 : vector<1x16x384xf32> to vector<16x384xf32>
    %5 = arith.truncf %4 : vector<16x384xf32> to vector<16x384xbf16>
    %c0_3 = arith.constant 0 : index
    %c0_4 = arith.constant 0 : index
    %6 = vector.load %arg3[%c0_3, %c0_4] : memref<32x16xbf16, #tpu.memory_space<vmem>>, vector<32x16xbf16>
    %cst = arith.constant dense<0.000000e+00> : vector<32x384xf32>
    %7 = tpu.matmul %6, %5, %cst {dimension_numbers = #tpu.dot_dimension_numbers<[1], [0], [0], [1], [0, 0, 1, 1], [], []>} : vector<32x16xbf16>, vector<16x384xbf16>, vector<32x384xf32> -> vector<32x384xf32>
    %c0_5 = arith.constant 0 : index
    %c0_6 = arith.constant 0 : index
    %8 = vector.load %arg4[%c0_5, %c0_6] : memref<32x1xf32, #tpu.memory_space<vmem>>, vector<32x1xf32>
    %9 = vector.broadcast %8 : vector<32x1xf32> to vector<32x384xf32>
    %10 = arith.addf %7, %9 : vector<32x384xf32>
    %11 = math.tanh %10 : vector<32x384xf32>
    %c0_7 = arith.constant 0 : index
    %c0_8 = arith.constant 0 : index
    %12 = vector.load %arg5[%c0_7, %c0_8] : memref<16x32xbf16, #tpu.memory_space<vmem>>, vector<16x32xbf16>
    %13 = arith.truncf %11 : vector<32x384xf32> to vector<32x384xbf16>
    %cst_9 = arith.constant dense<0.000000e+00> : vector<16x384xf32>
    %14 = tpu.matmul %12, %13, %cst_9 {dimension_numbers = #tpu.dot_dimension_numbers<[1], [0], [0], [1], [0, 0, 1, 1], [], []>} : vector<16x32xbf16>, vector<32x384xbf16>, vector<16x384xf32> -> vector<16x384xf32>
    %c0_10 = arith.constant 0 : index
    %c0_11 = arith.constant 0 : index
    %15 = vector.load %arg6[%c0_10, %c0_11] : memref<16x1xf32, #tpu.memory_space<vmem>>, vector<16x1xf32>
    %16 = vector.broadcast %15 : vector<16x1xf32> to vector<16x384xf32>
    %17 = arith.addf %14, %16 : vector<16x384xf32>
    %18 = vector.extract_strided_slice %17 {offsets = [0, 0], sizes = [16, 128], strides = [1, 1]} : vector<16x384xf32> to vector<16x128xf32>
    %19 = vector.extract_strided_slice %17 {offsets = [0, 128], sizes = [16, 128], strides = [1, 1]} : vector<16x384xf32> to vector<16x128xf32>
    %20 = arith.maximumf %18, %19 : vector<16x128xf32>
    %21 = vector.extract_strided_slice %17 {offsets = [0, 256], sizes = [16, 128], strides = [1, 1]} : vector<16x384xf32> to vector<16x128xf32>
    %22 = arith.maximumf %20, %21 : vector<16x128xf32>
    %c0_12 = arith.constant 0 : index
    %c0_13 = arith.constant 0 : index
    %23 = vector.load %arg8[%c0_12, %c0_13] : memref<16x128xf32, #tpu.memory_space<vmem>>, vector<16x128xf32>
    %24 = arith.maximumf %23, %22 : vector<16x128xf32>
    %25 = arith.subf %23, %24 : vector<16x128xf32>
    %26 = math.exp %25 : vector<16x128xf32>
    %c0_14 = arith.constant 0 : index
    %c0_15 = arith.constant 0 : index
    %27 = vector.load %arg9[%c0_14, %c0_15] : memref<16x128xf32, #tpu.memory_space<vmem>>, vector<16x128xf32>
    %28 = arith.mulf %26, %27 : vector<16x128xf32>
    %c0_16 = arith.constant 0 : index
    %c0_17 = arith.constant 0 : index
    %29 = vector.load %arg10[%c0_16, %c0_17] : memref<16x128xf32, #tpu.memory_space<vmem>>, vector<16x128xf32>
    %30 = arith.mulf %26, %29 : vector<16x128xf32>
    %c0_18 = arith.constant 0 : index
    %c0_19 = arith.constant 0 : index
    %31 = vector.load %arg11[%c0_18, %c0_19] : memref<16x128xf32, #tpu.memory_space<vmem>>, vector<16x128xf32>
    %32 = arith.mulf %26, %31 : vector<16x128xf32>
    %33 = arith.subf %18, %24 : vector<16x128xf32>
    %34 = math.exp %33 : vector<16x128xf32>
    %35 = vector.extract_strided_slice %4 {offsets = [0, 0], sizes = [16, 128], strides = [1, 1]} : vector<16x384xf32> to vector<16x128xf32>
    %36 = arith.mulf %34, %35 : vector<16x128xf32>
    %37 = arith.addf %28, %34 : vector<16x128xf32>
    %38 = arith.addf %30, %36 : vector<16x128xf32>
    %39 = arith.mulf %36, %35 : vector<16x128xf32>
    %40 = arith.addf %32, %39 : vector<16x128xf32>
    %41 = arith.subf %19, %24 : vector<16x128xf32>
    %42 = math.exp %41 : vector<16x128xf32>
    %43 = vector.extract_strided_slice %4 {offsets = [0, 128], sizes = [16, 128], strides = [1, 1]} : vector<16x384xf32> to vector<16x128xf32>
    %44 = arith.mulf %42, %43 : vector<16x128xf32>
    %45 = arith.addf %37, %42 : vector<16x128xf32>
    %46 = arith.addf %38, %44 : vector<16x128xf32>
    %47 = arith.mulf %44, %43 : vector<16x128xf32>
    %48 = arith.addf %40, %47 : vector<16x128xf32>
    %49 = arith.subf %21, %24 : vector<16x128xf32>
    %50 = math.exp %49 : vector<16x128xf32>
    %51 = vector.extract_strided_slice %4 {offsets = [0, 256], sizes = [16, 128], strides = [1, 1]} : vector<16x384xf32> to vector<16x128xf32>
    %52 = arith.mulf %50, %51 : vector<16x128xf32>
    %53 = arith.addf %45, %50 : vector<16x128xf32>
    %54 = arith.addf %46, %52 : vector<16x128xf32>
    %55 = arith.mulf %52, %51 : vector<16x128xf32>
    %56 = arith.addf %48, %55 : vector<16x128xf32>
    %c0_20 = arith.constant 0 : index
    %c0_21 = arith.constant 0 : index
    %57 = vector.load %arg9[%c0_20, %c0_21] : memref<16x128xf32, #tpu.memory_space<vmem>>, vector<16x128xf32>
    tpu.vector_store %arg9[%c0_20, %c0_21], %53 {strides = array<i32>} : memref<16x128xf32, #tpu.memory_space<vmem>>, vector<16x128xf32>,
    %c0_22 = arith.constant 0 : index
    %c0_23 = arith.constant 0 : index
    %58 = vector.load %arg10[%c0_22, %c0_23] : memref<16x128xf32, #tpu.memory_space<vmem>>, vector<16x128xf32>
    tpu.vector_store %arg10[%c0_22, %c0_23], %54 {strides = array<i32>} : memref<16x128xf32, #tpu.memory_space<vmem>>, vector<16x128xf32>,
    %c0_24 = arith.constant 0 : index
    %c0_25 = arith.constant 0 : index
    %59 = vector.load %arg11[%c0_24, %c0_25] : memref<16x128xf32, #tpu.memory_space<vmem>>, vector<16x128xf32>
    tpu.vector_store %arg11[%c0_24, %c0_25], %56 {strides = array<i32>} : memref<16x128xf32, #tpu.memory_space<vmem>>, vector<16x128xf32>,
    %c0_26 = arith.constant 0 : index
    %c0_27 = arith.constant 0 : index
    %60 = vector.load %arg8[%c0_26, %c0_27] : memref<16x128xf32, #tpu.memory_space<vmem>>, vector<16x128xf32>
    tpu.vector_store %arg8[%c0_26, %c0_27], %24 {strides = array<i32>} : memref<16x128xf32, #tpu.memory_space<vmem>>, vector<16x128xf32>,
    %c0_i32_28 = arith.constant 0 : i32
    %61 = arith.cmpi eq, %arg1, %c0_i32_28 : i32
    %62 = arith.extui %61 : i1 to i32
    %c0_i32_29 = arith.constant 0 : i32
    %63 = arith.cmpi ne, %62, %c0_i32_29 : i32
    scf.if %63 {
      %cst_30 = arith.constant dense<0xFF800000> : vector<16xf32>
      %64 = vector.multi_reduction <maximumf>, %24, %cst_30 [1] : vector<16x128xf32> to vector<16xf32>
      %65 = vector.shape_cast %64 : vector<16xf32> to vector<16x1xf32>
      %66 = vector.broadcast %65 : vector<16x1xf32> to vector<16x128xf32>
      %67 = arith.subf %24, %66 : vector<16x128xf32>
      %68 = math.exp %67 : vector<16x128xf32>
      %69 = arith.mulf %68, %53 : vector<16x128xf32>
      %cst_31 = arith.constant dense<0.000000e+00> : vector<16xf32>
      %70 = vector.multi_reduction <add>, %69, %cst_31 [1] : vector<16x128xf32> to vector<16xf32>
      %71 = vector.shape_cast %70 : vector<16xf32> to vector<16x1xf32>
      %72 = arith.mulf %68, %54 : vector<16x128xf32>
      %cst_32 = arith.constant dense<0.000000e+00> : vector<16xf32>
      %73 = vector.multi_reduction <add>, %72, %cst_32 [1] : vector<16x128xf32> to vector<16xf32>
      %74 = vector.shape_cast %73 : vector<16xf32> to vector<16x1xf32>
      %75 = arith.mulf %68, %56 : vector<16x128xf32>
      %cst_33 = arith.constant dense<0.000000e+00> : vector<16xf32>
      %76 = vector.multi_reduction <add>, %75, %cst_33 [1] : vector<16x128xf32> to vector<16xf32>
      %77 = vector.shape_cast %76 : vector<16xf32> to vector<16x1xf32>
      %78 = arith.divf %74, %71 : vector<16x1xf32>
      %79 = arith.divf %77, %71 : vector<16x1xf32>
      %80 = arith.mulf %78, %78 : vector<16x1xf32>
      %81 = arith.subf %79, %80 : vector<16x1xf32>
      %cst_34 = arith.constant 9.99999971E-10 : f32
      %82 = vector.broadcast %cst_34 : f32 to vector<16x1xf32>
      %83 = arith.maximumf %81, %82 : vector<16x1xf32>
      %84 = math.sqrt %83 : vector<16x1xf32>
      %85 = tpu.concatenate %78, %84 in 0 : vector<16x1xf32>, vector<16x1xf32> -> vector<32x1xf32>
      %86 = tpu.transpose %85, [1, 0] : vector<32x1xf32> -> vector<1x32xf32>
      %c0_35 = arith.constant 0 : index
      %c0_36 = arith.constant 0 : index
      %c0_37 = arith.constant 0 : index
      %87 = vector.load %arg7[%c0_35, %c0_36, %c0_37] : memref<1x1x32xf32, #tpu.memory_space<vmem>>, vector<1x1x32xf32>
      %88 = vector.shape_cast %87 : vector<1x1x32xf32> to vector<1x32xf32>
      %89 = vector.shape_cast %86 : vector<1x32xf32> to vector<1x1x32xf32>
      tpu.vector_store %arg7[%c0_35, %c0_36, %c0_37], %89 {strides = array<i32>} : memref<1x1x32xf32, #tpu.memory_space<vmem>>, vector<1x1x32xf32>,
    } else {
    }
    return
  }
  func.func @transform_0(%arg0: i32, %arg1: i32) -> (i32, i32, i32) {
    %c0_i32 = arith.constant 0 : i32
    %c0_i32_0 = arith.constant 0 : i32
    return %arg0, %c0_i32, %arg1 : i32, i32, i32
  }
  func.func @transform_1(%arg0: i32, %arg1: i32) -> (i32, i32) {
    %c0_i32 = arith.constant 0 : i32
    %c0_i32_0 = arith.constant 0 : i32
    %c0_i32_1 = arith.constant 0 : i32
    return %c0_i32, %c0_i32_0 : i32, i32
  }
  func.func @transform_2(%arg0: i32, %arg1: i32) -> (i32, i32) {
    %c0_i32 = arith.constant 0 : i32
    %c0_i32_0 = arith.constant 0 : i32
    %c0_i32_1 = arith.constant 0 : i32
    return %c0_i32, %c0_i32_0 : i32, i32
  }
  func.func @transform_3(%arg0: i32, %arg1: i32) -> (i32, i32) {
    %c0_i32 = arith.constant 0 : i32
    %c0_i32_0 = arith.constant 0 : i32
    %c0_i32_1 = arith.constant 0 : i32
    return %c0_i32, %c0_i32_0 : i32, i32
  }
  func.func @transform_4(%arg0: i32, %arg1: i32) -> (i32, i32) {
    %c0_i32 = arith.constant 0 : i32
    %c0_i32_0 = arith.constant 0 : i32
    %c0_i32_1 = arith.constant 0 : i32
    return %c0_i32, %c0_i32_0 : i32, i32
  }
  func.func @transform_5(%arg0: i32, %arg1: i32) -> (i32, i32, i32) {
    %c0_i32 = arith.constant 0 : i32
    %c0_i32_0 = arith.constant 0 : i32
    %c0_i32_1 = arith.constant 0 : i32
    return %arg0, %c0_i32, %c0_i32_0 : i32, i32, i32
  }
}

</mosaic_0001>

<llo_original>
// kernel: tpu_custom_call.1
$region0: #{tpu_custom_call.1}
  #allocation0 [shape = 'u32[]', space=smem, size = 0x4, offset = 0x4, fixed_abs, tag = 'smem constant byte address 0x4 - core index']
  #allocation1 [shape = 'u32[144,128]{1,0:T(1,128)}', space=vmem, size = 0x12000, scoped, tag = 'internal scratch']
  #allocation2 [shape = 'f32[16,128]{1,0:T(8,128)}', space=vmem, size = 0x2000, scoped, tag = 'scratch operand']
  #allocation3 [shape = 'f32[16,128]{1,0:T(8,128)}', space=vmem, size = 0x2000, scoped, tag = 'scratch operand']
  #allocation4 [shape = 'f32[16,128]{1,0:T(8,128)}', space=vmem, size = 0x2000, scoped, tag = 'scratch operand']
  #allocation5 [shape = 'f32[16,128]{1,0:T(8,128)}', space=vmem, size = 0x2000, scoped, tag = 'scratch operand']
  %s0 = inlined_call_operand.hbm [shape: f32[2,16,384], index: 0, kind: input, shape index: {}]
  %s1 = inlined_call_operand.vmem [shape: bf16[32,16], index: 1, kind: input, shape index: {}]
  %s2 = inlined_call_operand.vmem [shape: f32[32,1], index: 2, kind: input, shape index: {}]
  %s3 = inlined_call_operand.vmem [shape: bf16[16,32], index: 3, kind: input, shape index: {}]
  %s4 = inlined_call_operand.vmem [shape: f32[16,1], index: 4, kind: input, shape index: {}]
  %s5 = inlined_call_operand.hbm [shape: f32[2,1,32], index: 5, kind: output, shape index: {}]
  %s6 = sld [smem:[#allocation0]]
  $region65: #{tpu_custom_call.1} parent=0
    _
  %s8 = ssub.s32 1, %s6
  %s9 = scalar_select 0, %s8, %s6
  $region1: #{tpu_custom_call.1} parent=0
    #allocation6 [shape = 'u8[49152]{0}', space=vmem, size = 0xc000, scoped, tag = 'input window, operand 0']
    #allocation7 [shape = 's32[2]{0}', space=sflag, size = 0x8, scoped, tag = 'scoped memory for tpu_custom_call.1']
    #allocation8 [shape = 's32[2]{0}', space=sflag, size = 0x8, scoped, tag = 'scoped memory for tpu_custom_call.1']
    #allocation9 [shape = 'u8[1024]{0}', space=vmem, size = 0x400, scoped, tag = 'output window, operand 0']
    %10 = vsyncpa [#allocation7], 0
    %s11 = scalar_lea.sflag [#allocation7], 1
    %12 = vsyncpa %s11, 0
    %13 = vsyncpa [#allocation8], 0
    %s14 = scalar_lea.sflag [#allocation8], 1
    %15 = vsyncpa %s14, 0
    loop: start=0, step=1, limit=4
    $region2: #{tpu_custom_call.1} parent=1 // loop_pre_header
      _
    $region3: #{tpu_custom_call.1} parent=1 // loop_header
      %s17 = sphi 0, %s21
      %p18 = scmp.ge.s32.totalorder %s17, 4
      %s24 = sphi 0, %s36
      %s25 = sphi 0, %s32
      %s26 = sphi 0, %s24
      %s27 = sphi 0, %s25
      %s28 = sphi 0, %s26
      %s29 = sphi 0, %s27
      %s41 = sphi 0, %s43
      %s44 = sphi 0, %s41
      %s45 = sphi 0, %s44
      %s61 = sphi 0, %s45
      %s65 = sphi 0, %s65
      %s67 = sphi 0, %s65
      %s68 = sphi 0, %s67
      %s82 = sphi 0, %s68
      %s86 = sphi 0, %s86
      %s88 = sphi 0, %s86
      %s89 = sphi 0, %s88
      %s103 = sphi 0, %s89
      %s107 = sphi 0, %s107
      %s109 = sphi 0, %s107
      %s110 = sphi 0, %s109
      %s124 = sphi 0, %s110
      %s128 = sphi 0, %s128
      %s130 = sphi 0, %s128
      %s131 = sphi 0, %s130
      %s145 = sphi 0, %s131
      %s151 = sphi 0, %s153
      %s154 = sphi 0, %s151
      %s155 = sphi 0, %s154
      %s171 = sphi 0, %s155
    $region4: #{tpu_custom_call.1} parent=1 // loop_header_branch
      %20 = sbr.rel (%p18) target = $region8
    $region5: #{tpu_custom_call.1} parent=1 // loop_body
      %s22 = ssub.s32 %s17, 1
      %s23 = ssub.s32 %s17, 2
      %s30 = sadd.s32 1, %s25
      %p31 = scmp.ge.s32.totalorder %s30, 1
      %s32 = scalar_select %p31, 0, %s30
      %s33 = sadd.s32 1, %s24
      %s34 = scalar_select %p31, %s33, %s24
      %p35 = scmp.ge.s32.totalorder %s34, 2
      %s36 = scalar_select %p35, 0, %s34
      %s37 = ssub.s32 %s24, %s36
      %s38 = ssub.s32 %s25, %s32
      %s39 = sor.u32 %s37, %s38
      %p40 = scmp.eq.s32.totalorder %s39, 0
      %s42 = sadd.s32 %s41, 1
      %s43 = scalar_select %p40, %s41, %s42
      %p46 = pneg %p40
      %p47 = scmp.eq.s32.totalorder %s17, 1
      %p48 = por %p46, %p47
      %p49 = scmp.ne.s32.totalorder %s41, %s44
      %p50 = scmp.eq.s32.totalorder %s17, 0
      %p51 = por %p49, %p50
      %p52 = scmp.ne.s32.totalorder %s41, %s44
      %p53 = scmp.eq.s32.totalorder %s22, 1
      %p54 = por %p52, %p53
      %p55 = scmp.ne.s32.totalorder %s44, %s45
      %p56 = scmp.eq.s32.totalorder %s22, 0
      %p57 = por %p55, %p56
      %p58 = scmp.ne.s32.totalorder %s44, %s45
      %p59 = scmp.eq.s32.totalorder %s23, 1
      %p60 = por %p58, %p59
      %p62 = scmp.ne.s32.totalorder %s45, %s61
      %p63 = scmp.eq.s32.totalorder %s23, 0
      %p64 = por %p62, %p63
      %s66 = sadd.s32 %s65, 1
      %p69 = scmp.eq.s32.totalorder %s17, 1
      %p70 = scmp.ne.s32.totalorder %s65, %s67
      %p71 = scmp.eq.s32.totalorder %s17, 0
      %p72 = por %p70, %p71
      %p73 = scmp.ne.s32.totalorder %s65, %s67
      %p74 = scmp.eq.s32.totalorder %s22, 1
      %p75 = por %p73, %p74
      %p76 = scmp.ne.s32.totalorder %s67, %s68
      %p77 = scmp.eq.s32.totalorder %s22, 0
      %p78 = por %p76, %p77
      %p79 = scmp.ne.s32.totalorder %s67, %s68
      %p80 = scmp.eq.s32.totalorder %s23, 1
      %p81 = por %p79, %p80
      %p83 = scmp.ne.s32.totalorder %s68, %s82
      %p84 = scmp.eq.s32.totalorder %s23, 0
      %p85 = por %p83, %p84
      %s87 = sadd.s32 %s86, 1
      %p90 = scmp.eq.s32.totalorder %s17, 1
      %p91 = scmp.ne.s32.totalorder %s86, %s88
      %p92 = scmp.eq.s32.totalorder %s17, 0
      %p93 = por %p91, %p92
      %p94 = scmp.ne.s32.totalorder %s86, %s88
      %p95 = scmp.eq.s32.totalorder %s22, 1
      %p96 = por %p94, %p95
      %p97 = scmp.ne.s32.totalorder %s88, %s89
      %p98 = scmp.eq.s32.totalorder %s22, 0
      %p99 = por %p97, %p98
      %p100 = scmp.ne.s32.totalorder %s88, %s89
      %p101 = scmp.eq.s32.totalorder %s23, 1
      %p102 = por %p100, %p101
      %p104 = scmp.ne.s32.totalorder %s89, %s103
      %p105 = scmp.eq.s32.totalorder %s23, 0
      %p106 = por %p104, %p105
      %s108 = sadd.s32 %s107, 1
      %p111 = scmp.eq.s32.totalorder %s17, 1
      %p112 = scmp.ne.s32.totalorder %s107, %s109
      %p113 = scmp.eq.s32.totalorder %s17, 0
      %p114 = por %p112, %p113
      %p115 = scmp.ne.s32.totalorder %s107, %s109
      %p116 = scmp.eq.s32.totalorder %s22, 1
      %p117 = por %p115, %p116
      %p118 = scmp.ne.s32.totalorder %s109, %s110
      %p119 = scmp.eq.s32.totalorder %s22, 0
      %p120 = por %p118, %p119
      %p121 = scmp.ne.s32.totalorder %s109, %s110
      %p122 = scmp.eq.s32.totalorder %s23, 1
      %p123 = por %p121, %p122
      %p125 = scmp.ne.s32.totalorder %s110, %s124
      %p126 = scmp.eq.s32.totalorder %s23, 0
      %p127 = por %p125, %p126
      %s129 = sadd.s32 %s128, 1
      %p132 = scmp.eq.s32.totalorder %s17, 1
      %p133 = scmp.ne.s32.totalorder %s128, %s130
      %p134 = scmp.eq.s32.totalorder %s17, 0
      %p135 = por %p133, %p134
      %p136 = scmp.ne.s32.totalorder %s128, %s130
      %p137 = scmp.eq.s32.totalorder %s22, 1
      %p138 = por %p136, %p137
      %p139 = scmp.ne.s32.totalorder %s130, %s131
      %p140 = scmp.eq.s32.totalorder %s22, 0
      %p141 = por %p139, %p140
      %p142 = scmp.ne.s32.totalorder %s130, %s131
      %p143 = scmp.eq.s32.totalorder %s23, 1
      %p144 = por %p142, %p143
      %p146 = scmp.ne.s32.totalorder %s131, %s145
      %p147 = scmp.eq.s32.totalorder %s23, 0
      %p148 = por %p146, %p147
      %s149 = ssub.s32 %s24, %s36
      %p150 = scmp.eq.s32.totalorder %s149, 0
      %s152 = sadd.s32 %s151, 1
      %s153 = scalar_select %p150, %s151, %s152
      %p156 = pneg %p150
      %p157 = scmp.eq.s32.totalorder %s17, 1
      %p158 = por %p156, %p157
      %p159 = scmp.ne.s32.totalorder %s151, %s154
      %p160 = scmp.eq.s32.totalorder %s17, 0
      %p161 = por %p159, %p160
      %p162 = scmp.ne.s32.totalorder %s151, %s154
      %p163 = scmp.eq.s32.totalorder %s22, 1
      %p164 = por %p162, %p163
      %p165 = scmp.ne.s32.totalorder %s154, %s155
      %p166 = scmp.eq.s32.totalorder %s22, 0
      %p167 = por %p165, %p166
      %p168 = scmp.ne.s32.totalorder %s154, %s155
      %p169 = scmp.eq.s32.totalorder %s23, 1
      %p170 = por %p168, %p169
      %p172 = scmp.ne.s32.totalorder %s155, %s171
      %p173 = scmp.eq.s32.totalorder %s23, 0
      %p174 = por %p172, %p173
      %p175 = scmp.le.s32.totalorder 1, %s17
      %p176 = scmp.lt.s32.totalorder %s17, 3
      %p177 = pnand %p175, %p176
      %p178 = pneg %p177
      // Predicated region
      $region9: #{tpu_custom_call.1} parent=5 // pred_check
        _
      $region10: #{tpu_custom_call.1} parent=5 // pred_check_branch
        %180 = sbr.rel (%p177) target = $region12
      $region11: #{tpu_custom_call.1} parent=5 // pred_region
        %s181 = ssub.s32 %s17, 1
        // Predicated region
        $region13: #{tpu_custom_call.1} parent=11 // pred_check
          %p182 = pneg %p78
        $region14: #{tpu_custom_call.1} parent=11 // pred_check_branch
          %184 = sbr.rel (%p182) target = $region16
        $region15: #{tpu_custom_call.1} parent=11 // pred_region
          _
        $region16: #{tpu_custom_call.1} parent=11 // pred_fallthru
          _
        // Predicated region
        $region17: #{tpu_custom_call.1} parent=11 // pred_check
          %p185 = pneg %p99
        $region18: #{tpu_custom_call.1} parent=11 // pred_check_branch
          %187 = sbr.rel (%p185) target = $region20
        $region19: #{tpu_custom_call.1} parent=11 // pred_region
          _
        $region20: #{tpu_custom_call.1} parent=11 // pred_fallthru
          _
        // Predicated region
        $region21: #{tpu_custom_call.1} parent=11 // pred_check
          %p188 = pneg %p120
        $region22: #{tpu_custom_call.1} parent=11 // pred_check_branch
          %190 = sbr.rel (%p188) target = $region24
        $region23: #{tpu_custom_call.1} parent=11 // pred_region
          _
        $region24: #{tpu_custom_call.1} parent=11 // pred_fallthru
          _
        // Predicated region
        $region25: #{tpu_custom_call.1} parent=11 // pred_check
          %p191 = pneg %p141
        $region26: #{tpu_custom_call.1} parent=11 // pred_check_branch
          %193 = sbr.rel (%p191) target = $region28
        $region27: #{tpu_custom_call.1} parent=11 // pred_region
          _
        $region28: #{tpu_custom_call.1} parent=11 // pred_fallthru
          _
      $region12: #{tpu_custom_call.1} parent=5 // pred_fallthru
        _
      %p194 = scmp.lt.s32.totalorder %s17, 2
      // Predicated region
      $region29: #{tpu_custom_call.1} parent=5 // pred_check
        %p195 = pneg %p194
      $region30: #{tpu_custom_call.1} parent=5 // pred_check_branch
        %197 = sbr.rel (%p195) target = $region32
      $region31: #{tpu_custom_call.1} parent=5 // pred_region
        // Predicated region
        $region33: #{tpu_custom_call.1} parent=31 // pred_check
          %p198 = pneg %p51
        $region34: #{tpu_custom_call.1} parent=31 // pred_check_branch
          %200 = sbr.rel (%p198) target = $region36
        $region35: #{tpu_custom_call.1} parent=31 // pred_region
          %s201 = sand.u32 %s41, 1
          %s202 = scalar_lea.sflag [#allocation7], %s201
          %s203 = sand.u32 %s41, 1
          %s204 = smul.addr %s203, 48
          %s205 = scalar_lea.vmem [#allocation6], %s204
          %s206 = smul.u32 3, %s25
          %s208 = ssub.s32 768, 768
          %209 = vsyncadd %s202, %s208
          %s210 = smul.addr %s24, 6
          %s211 = sadd.s32 %s206, %s210
          %s212 = smul.addr %s211, 128
          %s213 = scalar_lea.hbm %s0, %s212
          %s214 = sshll.u32 %s205, 4
          %s215 = int_to_ptr.vmem [resolvable:$true] %s214
          %220 = dma.hbm_to_vmem [thread:$0]  %s213, 768, %s215, %s202, 384, 384, 24
        $region36: #{tpu_custom_call.1} parent=31 // pred_fallthru
          _
      $region32: #{tpu_custom_call.1} parent=5 // pred_fallthru
        _
      %p221 = scmp.le.s32.totalorder 1, %s17
      %p222 = scmp.lt.s32.totalorder %s17, 3
      %p223 = pnand %p221, %p222
      %p224 = pneg %p223
      // Predicated region
      $region37: #{tpu_custom_call.1} parent=5 // pred_check
        _
      $region38: #{tpu_custom_call.1} parent=5 // pred_check_branch
        %226 = sbr.rel (%p223) target = $region40
      $region39: #{tpu_custom_call.1} parent=5 // pred_region
        %s227 = ssub.s32 %s17, 1
        %s228 = sand.u32 %s44, 1
        %s229 = scalar_lea.sflag [#allocation7], %s228
        %s230 = sand.u32 %s44, 1
        %s231 = smul.addr %s230, 48
        %s232 = scalar_lea.vmem [#allocation6], %s231
        // Predicated region
        $region41: #{tpu_custom_call.1} parent=39 // pred_check
          %p233 = pneg %p57
        $region42: #{tpu_custom_call.1} parent=39 // pred_check_branch
          %235 = sbr.rel (%p233) target = $region44
        $region43: #{tpu_custom_call.1} parent=39 // pred_region
          %236 = dma.done %s229, 768
        $region44: #{tpu_custom_call.1} parent=39 // pred_fallthru
          _
        %s237 = sand.u32 %s44, 1
        %s238 = scalar_lea.sflag [#allocation7], %s237
        %s239 = sand.u32 %s44, 1
        %s240 = smul.addr %s239, 48
        %s241 = scalar_lea.vmem [#allocation6], %s240
        %p242 = pneg %p57
        %p243 = pneg %p54
        %p244 = pneg %p78
        %p245 = pneg %p75
        %p246 = pneg %p99
        %p247 = pneg %p96
        %p248 = pneg %p120
        %p249 = pneg %p117
        %p250 = pneg %p141
        %p251 = pneg %p138
        %p252 = pneg %p167
        %p253 = pneg %p164
        %s254 = sand.u32 %s154, 1
        %s255 = scalar_lea.sflag [#allocation8], %s254
        %s256 = sand.u32 %s154, 1
        %s257 = scalar_lea.vmem [#allocation9], %s256
        %s258 = smul.u32 3, %s27
        %p260 = scmp.eq.s32.totalorder %s27, 0
        // Predicated region
        $region45: #{tpu_custom_call.1} parent=39 // pred_check
          %p261 = pneg %p260
        $region46: #{tpu_custom_call.1} parent=39 // pred_check_branch
          %263 = sbr.rel (%p261) target = $region48
        $region47: #{tpu_custom_call.1} parent=39 // pred_region
          %264 = vst [vmem:[#allocation2] sm:$0xff] -1e+30
          %265 = vst [vmem:[#allocation2 + $0x8] sm:$0xff] -1e+30
          %266 = vst [vmem:[#allocation3] sm:$0xff] 0.0
          %267 = vst [vmem:[#allocation3 + $0x8] sm:$0xff] 0.0
          %268 = vst [vmem:[#allocation4] sm:$0xff] 0.0
          %269 = vst [vmem:[#allocation4 + $0x8] sm:$0xff] 0.0
          %270 = vst [vmem:[#allocation5] sm:$0xff] 0.0
          %271 = vst [vmem:[#allocation5 + $0x8] sm:$0xff] 0.0
        $region48: #{tpu_custom_call.1} parent=39 // pred_fallthru
          _
        %v272 = vld [vmem:[%s232] sm:$0xff]
        %v273 = vld [vmem:[%s232 + $0x8] sm:$0xff]
        %v274 = vld [vmem:[%s232 + $0x10] sm:$0xff]
        %v275 = vld [vmem:[%s232 + $0x18] sm:$0xff]
        %v276 = vld [vmem:[%s232 + $0x20] sm:$0xff]
        %v277 = vld [vmem:[%s232 + $0x28] sm:$0xff]
        %v278 = vpack.c.bf16 %v275, %v272
        %v279 = vpack.c.bf16 %v276, %v273
        %v280 = vpack.c.bf16 %v277, %v274
        %v281 = vld [vmem:[%s1] sm:$0xf]
        %v282 = vld [vmem:[%s1 + $0x4] sm:$0xf]
        %v283 = vld [vmem:[%s1 + $0x8] sm:$0xf]
        %v284 = vld [vmem:[%s1 + $0xc] sm:$0xf]
        %v285 = vld [vmem:[%s2] sm:$0xff]
        %v286 = vld [vmem:[%s2 + $0x8] sm:$0xff]
        %v287 = vld [vmem:[%s2 + $0x10] sm:$0xff]
        %v288 = vld [vmem:[%s2 + $0x18] sm:$0xff]
        %290 = vset.pattern.permute.xlu0 0
        %291 = vperm.xlu0 %290, %v285
        %v292 = vpop.permute.xlu0 %291
        %295 = vset.pattern.permute.xlu0 0
        %296 = vperm.xlu0 %295, %v286
        %v297 = vpop.permute.xlu0 %296
        %300 = vset.pattern.permute.xlu0 0
        %301 = vperm.xlu0 %300, %v287
        %v302 = vpop.permute.xlu0 %301
        %305 = vset.pattern.permute.xlu0 0
        %306 = vperm.xlu0 %305, %v288
        %v307 = vpop.permute.xlu0 %306
        %v313 = vunpack.c.l.b16 %v281
        %v314 = vunpack.c.l.b16 %v282
        %v315 = vunpack.c.l.b16 %v283
        %v316 = vunpack.c.l.b16 %v284
        %v317 = vpack.c.b16 %v314, %v313
        %v318 = vpack.c.b16 %v316, %v315
        %vm319 = vcmask 130048
        %v321 = vsel %vm319, %v317, 0
        %v324 = vsel %vm319, %v318, 0
        %326 = vmatprep.subr.bf16.mxu0 %v279
        %327 = vmatpush1.bf16.msra.mxu0 %v278
        %328 = vmatprep.subr.bf16.mxu0 0
        %329 = vmatpush1.bf16.msra.mxu0 0
        %330 = vmatprep.subr.bf16.mxu0 0
        %331 = vmatpush1.bf16.msra.mxu0 0
        %332 = vmatprep.subr.bf16.mxu0 0
        %333 = vmatpush1.bf16.msra.mxu0 0
        %334 = vmatprep.subr.bf16.mxu0 0
        %335 = vmatpush1.bf16.msra.mxu0 0
        %336 = vmatprep.subr.bf16.mxu0 0
        %337 = vmatpush1.bf16.msra.mxu0 0
        %338 = vmatprep.subr.bf16.mxu0 0
        %339 = vmatpush1.bf16.msra.mxu0 0
        %340 = vmatprep.subr.bf16.mxu0 0
        %341 = vmatpush1.bf16.msra.mxu0 0
        %342 = vmatprep.subr.bf16.mxu0 0
        %343 = vmatpush1.bf16.msra.mxu0 0
        %344 = vmatprep.subr.bf16.mxu0 0
        %345 = vmatpush1.bf16.msra.mxu0 0
        %346 = vmatprep.subr.bf16.mxu0 0
        %347 = vmatpush1.bf16.msra.mxu0 0
        %348 = vmatprep.subr.bf16.mxu0 0
        %349 = vmatpush1.bf16.msra.mxu0 0
        %350 = vmatprep.subr.bf16.mxu0 0
        %351 = vmatpush1.bf16.msra.mxu0 0
        %352 = vmatprep.subr.bf16.mxu0 0
        %353 = vmatpush1.bf16.msra.mxu0 0
        %354 = vmatprep.subr.bf16.mxu0 0
        %355 = vmatpush1.bf16.msra.mxu0 0
        %356 = vmatprep.subr.bf16.mxu0 0
        %357 = vmatpush1.bf16.msra.mxu0 0
        %358 = vmatprep.mubr.bf16.mxu0 0
        %359 = vmatmul.mubr.bf16.gmra.mrb[0].mxu0 %v321
        %v360 = vpop.f32.mrb[0].mxu0
        %v361 = vadd.f32 %v292, %v360
        %v362 = vpop.f32.mrb[0].mxu0
        %v363 = vadd.f32 %v292, %v362
        %v364 = vpop.f32.mrb[0].mxu0
        %v365 = vadd.f32 %v297, %v364
        %v366 = vpop.f32.mrb[0].mxu0
        %v367 = vadd.f32 %v297, %v366
        %368 = vmatprep.mubr.bf16.mxu0 0
        %369 = vmatmul.mubr.bf16.gmra.mrb[0].mxu0 %v324
        %v370 = vpop.f32.mrb[0].mxu0
        %v371 = vadd.f32 %v302, %v370
        %v372 = vpop.f32.mrb[0].mxu0
        %v373 = vadd.f32 %v302, %v372
        %v374 = vpop.f32.mrb[0].mxu0
        %v375 = vadd.f32 %v307, %v374
        %v376 = vpop.f32.mrb[0].mxu0
        %v377 = vadd.f32 %v307, %v376
        %378 = vdwg.mxu0
        %379 = vmatprep.subr.bf16.mxu0 0
        %380 = vmatpush1.bf16.msra.mxu0 %v280
        %381 = vmatprep.subr.bf16.mxu0 0
        %382 = vmatpush1.bf16.msra.mxu0 0
        %383 = vmatprep.subr.bf16.mxu0 0
        %384 = vmatpush1.bf16.msra.mxu0 0
        %385 = vmatprep.subr.bf16.mxu0 0
        %386 = vmatpush1.bf16.msra.mxu0 0
        %387 = vmatprep.subr.bf16.mxu0 0
        %388 = vmatpush1.bf16.msra.mxu0 0
        %389 = vmatprep.subr.bf16.mxu0 0
        %390 = vmatpush1.bf16.msra.mxu0 0
        %391 = vmatprep.subr.bf16.mxu0 0
        %392 = vmatpush1.bf16.msra.mxu0 0
        %393 = vmatprep.subr.bf16.mxu0 0
        %394 = vmatpush1.bf16.msra.mxu0 0
        %395 = vmatprep.subr.bf16.mxu0 0
        %396 = vmatpush1.bf16.msra.mxu0 0
        %397 = vmatprep.subr.bf16.mxu0 0
        %398 = vmatpush1.bf16.msra.mxu0 0
        %399 = vmatprep.subr.bf16.mxu0 0
        %400 = vmatpush1.bf16.msra.mxu0 0
        %401 = vmatprep.subr.bf16.mxu0 0
        %402 = vmatpush1.bf16.msra.mxu0 0
        %403 = vmatprep.subr.bf16.mxu0 0
        %404 = vmatpush1.bf16.msra.mxu0 0
        %405 = vmatprep.subr.bf16.mxu0 0
        %406 = vmatpush1.bf16.msra.mxu0 0
        %407 = vmatprep.subr.bf16.mxu0 0
        %408 = vmatpush1.bf16.msra.mxu0 0
        %409 = vmatprep.subr.bf16.mxu0 0
        %410 = vmatpush1.bf16.msra.mxu0 0
        %411 = vmatprep.mubr.bf16.mxu0 0
        %412 = vmatmul.mubr.bf16.gmra.mrb[0].mxu0 %v321
        %v413 = vpop.f32.mrb[0].mxu0
        %v414 = vadd.f32 %v292, %v413
        %v415 = vpop.f32.mrb[0].mxu0
        %v416 = vpop.f32.mrb[0].mxu0
        %v417 = vadd.f32 %v297, %v416
        %v418 = vpop.f32.mrb[0].mxu0
        %419 = vmatprep.mubr.bf16.mxu0 0
        %420 = vmatmul.mubr.bf16.gmra.mrb[0].mxu0 %v324
        %v421 = vpop.f32.mrb[0].mxu0
        %v422 = vadd.f32 %v302, %v421
        %v423 = vpop.f32.mrb[0].mxu0
        %v424 = vpop.f32.mrb[0].mxu0
        %v425 = vadd.f32 %v307, %v424
        %v426 = vpop.f32.mrb[0].mxu0
        %427 = vdwg.mxu0
        %v428 = vtanh.pop %v361
        %v429 = vtanh.pop %v363
        %v430 = vtanh.pop %v414
        %v431 = vtanh.pop %v365
        %v432 = vtanh.pop %v367
        %v433 = vtanh.pop %v417
        %v434 = vtanh.pop %v371
        %v435 = vtanh.pop %v373
        %v436 = vtanh.pop %v422
        %v437 = vtanh.pop %v375
        %v438 = vtanh.pop %v377
        %v439 = vtanh.pop %v425
        %v440 = vld [vmem:[%s3] sm:$0xf]
        %v441 = vld [vmem:[%s3 + $0x4] sm:$0xf]
        %v442 = vpack.c.bf16 %v431, %v428
        %v443 = vpack.c.bf16 %v432, %v429
        %v444 = vpack.c.bf16 %v433, %v430
        %v445 = vpack.c.bf16 %v437, %v434
        %v446 = vpack.c.bf16 %v438, %v435
        %v447 = vpack.c.bf16 %v439, %v436
        %v448 = vld [vmem:[%s4] sm:$0xff]
        %v449 = vld [vmem:[%s4 + $0x8] sm:$0xff]
        %451 = vset.pattern.permute.xlu0 0
        %452 = vperm.xlu0 %451, %v448
        %v453 = vpop.permute.xlu0 %452
        %456 = vset.pattern.permute.xlu0 0
        %457 = vperm.xlu0 %456, %v449
        %v458 = vpop.permute.xlu0 %457
        %v462 = vunpack.c.l.b16 %v440
        %v463 = vunpack.c.l.b16 %v441
        %v464 = vpack.c.b16 %v463, %v462
        %vm465 = vcmask 261120
        %v467 = vsel %vm465, %v464, 0
        %469 = vmatprep.subr.bf16.mxu0 %v443
        %470 = vmatpush1.bf16.msra.mxu0 %v442
        %471 = vmatprep.subr.bf16.mxu0 %v446
        %472 = vmatpush1.bf16.msra.mxu0 %v445
        %473 = vmatprep.subr.bf16.mxu0 0
        %474 = vmatpush1.bf16.msra.mxu0 0
        %475 = vmatprep.subr.bf16.mxu0 0
        %476 = vmatpush1.bf16.msra.mxu0 0
        %477 = vmatprep.subr.bf16.mxu0 0
        %478 = vmatpush1.bf16.msra.mxu0 0
        %479 = vmatprep.subr.bf16.mxu0 0
        %480 = vmatpush1.bf16.msra.mxu0 0
        %481 = vmatprep.subr.bf16.mxu0 0
        %482 = vmatpush1.bf16.msra.mxu0 0
        %483 = vmatprep.subr.bf16.mxu0 0
        %484 = vmatpush1.bf16.msra.mxu0 0
        %485 = vmatprep.subr.bf16.mxu0 0
        %486 = vmatpush1.bf16.msra.mxu0 0
        %487 = vmatprep.subr.bf16.mxu0 0
        %488 = vmatpush1.bf16.msra.mxu0 0
        %489 = vmatprep.subr.bf16.mxu0 0
        %490 = vmatpush1.bf16.msra.mxu0 0
        %491 = vmatprep.subr.bf16.mxu0 0
        %492 = vmatpush1.bf16.msra.mxu0 0
        %493 = vmatprep.subr.bf16.mxu0 0
        %494 = vmatpush1.bf16.msra.mxu0 0
        %495 = vmatprep.subr.bf16.mxu0 0
        %496 = vmatpush1.bf16.msra.mxu0 0
        %497 = vmatprep.subr.bf16.mxu0 0
        %498 = vmatpush1.bf16.msra.mxu0 0
        %499 = vmatprep.subr.bf16.mxu0 0
        %500 = vmatpush1.bf16.msra.mxu0 0
        %501 = vmatprep.mubr.bf16.mxu0 0
        %502 = vmatmul.mubr.bf16.gmra.mrb[0].mxu0 %v467
        %v503 = vpop.f32.mrb[0].mxu0
        %v504 = vadd.f32 %v453, %v503
        %v505 = vpop.f32.mrb[0].mxu0
        %v506 = vadd.f32 %v453, %v505
        %v507 = vpop.f32.mrb[0].mxu0
        %v508 = vadd.f32 %v458, %v507
        %v509 = vpop.f32.mrb[0].mxu0
        %v510 = vadd.f32 %v458, %v509
        %511 = vdwg.mxu0
        %512 = vmatprep.subr.bf16.mxu0 0
        %513 = vmatpush1.bf16.msra.mxu0 %v444
        %514 = vmatprep.subr.bf16.mxu0 0
        %515 = vmatpush1.bf16.msra.mxu0 %v447
        %516 = vmatprep.subr.bf16.mxu0 0
        %517 = vmatpush1.bf16.msra.mxu0 0
        %518 = vmatprep.subr.bf16.mxu0 0
        %519 = vmatpush1.bf16.msra.mxu0 0
        %520 = vmatprep.subr.bf16.mxu0 0
        %521 = vmatpush1.bf16.msra.mxu0 0
        %522 = vmatprep.subr.bf16.mxu0 0
        %523 = vmatpush1.bf16.msra.mxu0 0
        %524 = vmatprep.subr.bf16.mxu0 0
        %525 = vmatpush1.bf16.msra.mxu0 0
        %526 = vmatprep.subr.bf16.mxu0 0
        %527 = vmatpush1.bf16.msra.mxu0 0
        %528 = vmatprep.subr.bf16.mxu0 0
        %529 = vmatpush1.bf16.msra.mxu0 0
        %530 = vmatprep.subr.bf16.mxu0 0
        %531 = vmatpush1.bf16.msra.mxu0 0
        %532 = vmatprep.subr.bf16.mxu0 0
        %533 = vmatpush1.bf16.msra.mxu0 0
        %534 = vmatprep.subr.bf16.mxu0 0
        %535 = vmatpush1.bf16.msra.mxu0 0
        %536 = vmatprep.subr.bf16.mxu0 0
        %537 = vmatpush1.bf16.msra.mxu0 0
        %538 = vmatprep.subr.bf16.mxu0 0
        %539 = vmatpush1.bf16.msra.mxu0 0
        %540 = vmatprep.subr.bf16.mxu0 0
        %541 = vmatpush1.bf16.msra.mxu0 0
        %542 = vmatprep.subr.bf16.mxu0 0
        %543 = vmatpush1.bf16.msra.mxu0 0
        %544 = vmatprep.mubr.bf16.mxu0 0
        %545 = vmatmul.mubr.bf16.gmra.mrb[0].mxu0 %v467
        %v546 = vpop.f32.mrb[0].mxu0
        %v547 = vadd.f32 %v453, %v546
        %v548 = vpop.f32.mrb[0].mxu0
        %v549 = vpop.f32.mrb[0].mxu0
        %v550 = vadd.f32 %v458, %v549
        %v551 = vpop.f32.mrb[0].mxu0
        %552 = vdwg.mxu0
        %v553 = vmax.f32 %v504, %v506
        %v554 = vmax.f32 %v508, %v510
        %v555 = vmax.f32 %v553, %v547
        %v556 = vmax.f32 %v554, %v550
        %v557 = vld [vmem:[#allocation2] sm:$0xff]
        %v558 = vld [vmem:[#allocation2 + $0x8] sm:$0xff]
        %v559 = vmax.f32 %v557, %v555
        %v560 = vmax.f32 %v558, %v556
        %v561 = vsub.f32 %v557, %v559
        %v562 = vsub.f32 %v558, %v560
        %v563 = vmul.f32 %v561, 1.442695
        %v564 = vpow.pop %v563
        %v565 = vmul.f32 %v562, 1.442695
        %v566 = vpow.pop %v565
        %v567 = vld [vmem:[#allocation3] sm:$0xff]
        %v568 = vld [vmem:[#allocation3 + $0x8] sm:$0xff]
        %v569 = vmul.f32 %v564, %v567
        %v570 = vmul.f32 %v566, %v568
        %v571 = vld [vmem:[#allocation4] sm:$0xff]
        %v572 = vld [vmem:[#allocation4 + $0x8] sm:$0xff]
        %v573 = vmul.f32 %v564, %v571
        %v574 = vmul.f32 %v566, %v572
        %v575 = vld [vmem:[#allocation5] sm:$0xff]
        %v576 = vld [vmem:[#allocation5 + $0x8] sm:$0xff]
        %v577 = vmul.f32 %v564, %v575
        %v578 = vmul.f32 %v566, %v576
        %v579 = vsub.f32 %v504, %v559
        %v580 = vsub.f32 %v508, %v560
        %v581 = vmul.f32 %v579, 1.442695
        %v582 = vpow.pop %v581
        %v583 = vmul.f32 %v580, 1.442695
        %v584 = vpow.pop %v583
        %v585 = vmul.f32 %v582, %v272
        %v586 = vmul.f32 %v584, %v275
        %v587 = vadd.f32 %v569, %v582
        %v588 = vadd.f32 %v570, %v584
        %v589 = vadd.f32 %v573, %v585
        %v590 = vadd.f32 %v574, %v586
        %v591 = vmul.f32 %v585, %v272
        %v592 = vmul.f32 %v586, %v275
        %v593 = vadd.f32 %v577, %v591
        %v594 = vadd.f32 %v578, %v592
        %v595 = vsub.f32 %v506, %v559
        %v596 = vsub.f32 %v510, %v560
        %v597 = vmul.f32 %v595, 1.442695
        %v598 = vpow.pop %v597
        %v599 = vmul.f32 %v596, 1.442695
        %v600 = vpow.pop %v599
        %v601 = vmul.f32 %v598, %v273
        %v602 = vmul.f32 %v600, %v276
        %v603 = vadd.f32 %v587, %v598
        %v604 = vadd.f32 %v588, %v600
        %v605 = vadd.f32 %v589, %v601
        %v606 = vadd.f32 %v590, %v602
        %v607 = vmul.f32 %v601, %v273
        %v608 = vmul.f32 %v602, %v276
        %v609 = vadd.f32 %v593, %v607
        %v610 = vadd.f32 %v594, %v608
        %v611 = vsub.f32 %v547, %v559
        %v612 = vsub.f32 %v550, %v560
        %v613 = vmul.f32 %v611, 1.442695
        %v614 = vpow.pop %v613
        %v615 = vmul.f32 %v612, 1.442695
        %v616 = vpow.pop %v615
        %v617 = vmul.f32 %v614, %v274
        %v618 = vmul.f32 %v616, %v277
        %v619 = vadd.f32 %v603, %v614
        %v620 = vadd.f32 %v604, %v616
        %v621 = vadd.f32 %v605, %v617
        %v622 = vadd.f32 %v606, %v618
        %v623 = vmul.f32 %v617, %v274
        %v624 = vmul.f32 %v618, %v277
        %v625 = vadd.f32 %v609, %v623
        %v626 = vadd.f32 %v610, %v624
        %627 = vst [vmem:[#allocation3] sm:$0xff] %v619
        %628 = vst [vmem:[#allocation3 + $0x8] sm:$0xff] %v620
        %629 = vst [vmem:[#allocation4] sm:$0xff] %v621
        %630 = vst [vmem:[#allocation4 + $0x8] sm:$0xff] %v622
        %631 = vst [vmem:[#allocation5] sm:$0xff] %v625
        %632 = vst [vmem:[#allocation5 + $0x8] sm:$0xff] %v626
        %633 = vst [vmem:[#allocation2] sm:$0xff] %v559
        %634 = vst [vmem:[#allocation2 + $0x8] sm:$0xff] %v560
        // Predicated region
        $region49: #{tpu_custom_call.1} parent=39 // pred_check
          %p635 = pneg %p260
        $region50: #{tpu_custom_call.1} parent=39 // pred_check_branch
          %637 = sbr.rel (%p635) target = $region52
        $region51: #{tpu_custom_call.1} parent=39 // pred_region
          %638 = vmax.xlane.f32.xlu0 %v559
          %v639 = vpop.xlane.xlu0 %638
          %640 = vmax.xlane.f32.xlu0 %v560
          %v641 = vpop.xlane.xlu0 %640
          %v642 = vsub.f32 %v559, %v639
          %v643 = vsub.f32 %v560, %v641
          %v644 = vmul.f32 %v642, 1.442695
          %v645 = vpow.pop %v644
          %v646 = vmul.f32 %v643, 1.442695
          %v647 = vpow.pop %v646
          %v648 = vmul.f32 %v645, %v619
          %v649 = vmul.f32 %v647, %v620
          %650 = vadd.xlane.f32.xlu0 %v648
          %v651 = vpop.xlane.xlu0 %650
          %652 = vadd.xlane.f32.xlu0 %v649
          %v653 = vpop.xlane.xlu0 %652
          %v654 = vmul.f32 %v645, %v621
          %v655 = vmul.f32 %v647, %v622
          %656 = vadd.xlane.f32.xlu0 %v654
          %v657 = vpop.xlane.xlu0 %656
          %658 = vadd.xlane.f32.xlu0 %v655
          %v659 = vpop.xlane.xlu0 %658
          %v660 = vmul.f32 %v645, %v625
          %v661 = vmul.f32 %v647, %v626
          %662 = vadd.xlane.f32.xlu0 %v660
          %v663 = vpop.xlane.xlu0 %662
          %664 = vadd.xlane.f32.xlu0 %v661
          %v665 = vpop.xlane.xlu0 %664
          %v666 = vrcp.pop %v651
          %v667 = vmul.f32 %v657, %v666
          %v668 = vrcp.pop %v653
          %v669 = vmul.f32 %v659, %v668
          %v670 = vmul.f32 %v663, %v666
          %v671 = vmul.f32 %v665, %v668
          %v672 = vmul.f32 %v667, %v667
          %v673 = vmul.f32 %v669, %v669
          %v674 = vsub.f32 %v670, %v672
          %v675 = vsub.f32 %v671, %v673
          %v676 = vmax.f32 %v674, 1e-09
          %v677 = vmax.f32 %v675, 1e-09
          %v678 = vrsqrt.pop %v676
          %v679 = vmul.f32 %v676, %v678
          %vm680 = vcmp.eq.f32.partialorder %v676, inf
          %v681 = vsel %vm680, %v676, %v679
          %vm682 = vcmp.eq.f32.partialorder %v676, 0.0
          %v683 = vand.u32 %v676, 2147483648
          %v684 = vsel %vm682, %v683, %v681
          %v685 = vrsqrt.pop %v677
          %v686 = vmul.f32 %v677, %v685
          %vm687 = vcmp.eq.f32.partialorder %v677, inf
          %v688 = vsel %vm687, %v677, %v686
          %vm689 = vcmp.eq.f32.partialorder %v677, 0.0
          %v690 = vand.u32 %v677, 2147483648
          %v691 = vsel %vm689, %v690, %v688
          %692 = vxpose.xlu0.b32.start [1/16] %v667, 128
          %693 = vxpose.xlu0.b32.cont [2/16] %v669, 128
          %694 = vxpose.xlu0.b32.cont [3/16] %v684, 128
          %695 = vxpose.xlu0.b32.cont [4/16] %v691, 128
          %696 = vxpose.xlu0.b32.cont [5/16] 0.0, 128
          %697 = vxpose.xlu0.b32.cont [6/16] 0.0, 128
          %698 = vxpose.xlu0.b32.cont [7/16] 0.0, 128
          %699 = vxpose.xlu0.b32.cont [8/16] 0.0, 128
          %700 = vxpose.xlu0.b32.cont [9/16] 0.0, 128
          %701 = vxpose.xlu0.b32.cont [10/16] 0.0, 128
          %702 = vxpose.xlu0.b32.cont [11/16] 0.0, 128
          %703 = vxpose.xlu0.b32.cont [12/16] 0.0, 128
          %704 = vxpose.xlu0.b32.cont [13/16] 0.0, 128
          %705 = vxpose.xlu0.b32.cont [14/16] 0.0, 128
          %706 = vxpose.xlu0.b32.cont [15/16] 0.0, 128
          %707 = vxpose.xlu0.b32.end [16/16] 0.0, 128
          %v708 = vpop.trf.xlu0
          %v709 = vpop.trf.xlu0
          %v710 = vpop.trf.xlu0
          %v711 = vpop.trf.xlu0
          %v712 = vpop.trf.xlu0
          %v713 = vpop.trf.xlu0
          %v714 = vpop.trf.xlu0
          %v715 = vpop.trf.xlu0
          %v716 = vpop.trf.xlu0
          %v717 = vpop.trf.xlu0
          %v718 = vpop.trf.xlu0
          %v719 = vpop.trf.xlu0
          %v720 = vpop.trf.xlu0
          %v721 = vpop.trf.xlu0
          %v722 = vpop.trf.xlu0
          %v723 = vpop.trf.xlu0
          %vm724 = vcmask 253952
          %725 = vst.msk [vmem:[%s257] sm:$0x1] %vm724, %v708
        $region52: #{tpu_custom_call.1} parent=39 // pred_fallthru
          _
        %s726 = sand.u32 %s154, 1
        %s727 = scalar_lea.sflag [#allocation8], %s726
        %s728 = sand.u32 %s154, 1
        %s729 = scalar_lea.vmem [#allocation9], %s728
        // Predicated region
        $region53: #{tpu_custom_call.1} parent=39 // pred_check
          %p730 = pneg %p164
        $region54: #{tpu_custom_call.1} parent=39 // pred_check_branch
          %732 = sbr.rel (%p730) target = $region56
        $region55: #{tpu_custom_call.1} parent=39 // pred_region
          %s734 = ssub.s32 16, 16
          %735 = vsyncadd %s727, %s734
          %s736 = smul.addr %s26, 16
          %s737 = scalar_lea.hbm %s5, %s736
          %s739 = sshll.u32 %s729, 4
          %s740 = int_to_ptr.vmem [resolvable:$true] %s739
          %742 = dma.vmem_to_hbm [thread:$0]  %s740, 16, %s737, %s727
        $region56: #{tpu_custom_call.1} parent=39 // pred_fallthru
          _
      $region40: #{tpu_custom_call.1} parent=5 // pred_fallthru
        _
      %p743 = scmp.le.s32.totalorder 2, %s17
      // Predicated region
      $region57: #{tpu_custom_call.1} parent=5 // pred_check
        %p744 = pneg %p743
      $region58: #{tpu_custom_call.1} parent=5 // pred_check_branch
        %746 = sbr.rel (%p744) target = $region60
      $region59: #{tpu_custom_call.1} parent=5 // pred_region
        %s747 = ssub.s32 %s17, 2
        // Predicated region
        $region61: #{tpu_custom_call.1} parent=59 // pred_check
          %p748 = pneg %p170
        $region62: #{tpu_custom_call.1} parent=59 // pred_check_branch
          %750 = sbr.rel (%p748) target = $region64
        $region63: #{tpu_custom_call.1} parent=59 // pred_region
          %s751 = sand.u32 %s155, 1
          %s752 = scalar_lea.sflag [#allocation8], %s751
          %s753 = sand.u32 %s155, 1
          %s754 = scalar_lea.vmem [#allocation9], %s753
          %755 = dma.done %s752, 16
        $region64: #{tpu_custom_call.1} parent=59 // pred_fallthru
          _
      $region60: #{tpu_custom_call.1} parent=5 // pred_fallthru
        _
    $region6: #{tpu_custom_call.1} parent=1 // loop_footer
      %s21 = sadd.s32 1, %s17
    $region7: #{tpu_custom_call.1} parent=1 // loop_footer_branch
      %16 = sbr.rel target = $region3
    $region8: #{tpu_custom_call.1} parent=1 // loop_exit
      _
    %756 = vsyncpa [#allocation7], 1
    %s757 = scalar_lea.sflag [#allocation7], 1
    %758 = vsyncpa %s757, 1
    %759 = vsyncpa [#allocation8], 1
    %s760 = scalar_lea.sflag [#allocation8], 1
    %761 = vsyncpa %s760, 1

</llo_original>
